<compile_context>
chip_gen: v6e
topology: v6e:2x2x1
jax: 0.10.0
libtpu: 0.0.40
codegen_flags: <defaults>
</compile_context>

<pallas_src>
import jax
import jax.numpy as jnp
from jax import lax
from jax.experimental import pallas as pl
from jax.experimental.pallas import tpu as pltpu


def _round_up(x, m):
    return ((x + m - 1) // m) * m


def mlp_l_kernel(x_ref, w_ref, b_ref, o_ref):
    # x_ref: (TB, K)   w_ref: (n_out, K)   b_ref: (n_out, 1)   o_ref: (n_out, TB)
    x = x_ref[...]
    w = w_ref[...]
    b = b_ref[...]

    # Linear, lane-dense orientation: (n_out, K) x (TB, K) -> (n_out, TB).
    # f32 MXU accumulation regardless of the input dtype (f32 or bf16).
    y = lax.dot_general(
        w, x, (((1,), (1,)), ((), ())), preferred_element_type=jnp.float32
    ) + b

    # LeakyReLU (PyTorch default negative_slope = 0.01).
    y = jnp.where(y >= 0, y, jnp.float32(0.01) * y)

    # Numerically-stable softmax over the n_out features (axis 0 here == dim=1
    # of the original (B, n_out) orientation).  Garbage columns from a ragged
    # last batch block stay inside their own column (reductions are over axis 0
    # only) and their stores are masked off, so they are harmless.
    y = y - jnp.max(y, axis=0, keepdims=True)
    e = jnp.exp(y)
    denom = jnp.sum(e, axis=0, keepdims=True)
    o_ref[...] = (e * pl.reciprocal(denom, approx=False)).astype(o_ref.dtype)


def mlp_l_forward(mlp_in, weight, bias, *, target_block_vmem_bytes=8 << 20):
    """Forward pass of MLP_L.

    mlp_in: (B, n_mlp), f32 or bf16 (bf16 halves HBM reads; MXU still acc f32).
    weight: (n_out, n_mlp)  -- PyTorch Linear layout, used directly.
    bias:   (n_out,)
    Returns (B, n_out) float32 softmax weights.
    """
    B, n_mlp = mlp_in.shape
    n_out = weight.shape[0]
    assert weight.shape == (n_out, n_mlp) and bias.shape == (n_out,)

    x = mlp_in                          # consumed in its own dtype, no forced cast
    w = weight.astype(x.dtype)          # tiny; match x for the MXU
    b2 = bias.reshape(n_out, 1).astype(jnp.float32)
    itemsize = jnp.dtype(x.dtype).itemsize

    # --- batch tile size, budgeted by *padded* VMEM bytes --------------------
    # The HBM DMA moves only logical bytes; padding to 128 lanes is a VMEM
    # capacity concern when picking tb.
    padded_row_bytes = _round_up(max(n_mlp, 128), 128) * itemsize
    tb_budget = (target_block_vmem_bytes // padded_row_bytes) // 128 * 128
    tb_budget = max(128, min(tb_budget, 32768))

    if B <= 256:
        # Single block covering the whole (small) batch: block == full array in
        # both dims, so no padding / ragged handling is needed at all.
        tb = B
        grid = 1
    else:
        # At least 2 tiles so the "parallel" axis can feed both TCs on v7x,
        # otherwise the largest tile that fits the VMEM budget.
        tb = min(tb_budget, _round_up(pl.cdiv(B, 2), 128))
        grid = pl.cdiv(B, tb)   # ragged last block: OOB reads harmless, stores masked

    cost = pl.CostEstimate(
        flops=2 * B * n_mlp * n_out + 10 * B * n_out,
        transcendentals=(n_out + 1) * B,
        bytes_accessed=B * n_mlp * itemsize
        + n_out * n_mlp * itemsize
        + n_out * 4
        + B * n_out * 4,
    )

    out = pl.pallas_call(
        mlp_l_kernel,
        out_shape=jax.ShapeDtypeStruct((n_out, B), jnp.float32),
        grid=(grid,),
        in_specs=[
            pl.BlockSpec((tb, n_mlp), lambda i: (i, 0)),        # x: pipelined tiles
            pl.BlockSpec((n_out, n_mlp), lambda i: (0, 0)),     # W: VMEM-resident
            pl.BlockSpec((n_out, 1), lambda i: (0, 0)),         # bias: VMEM-resident
        ],
        out_specs=pl.BlockSpec((n_out, tb), lambda i: (0, i)),  # lane-dense stores
        compiler_params=pltpu.CompilerParams(
            dimension_semantics=("parallel",),
            vmem_limit_bytes=32 * 1024 * 1024,  # safe on v5e/v6e/v7x for this sizing
        ),
        cost_estimate=cost,
    )(x, w, b2)

    # (n_out, B) -> (B, n_out) to match the PyTorch module's orientation.  This
    # is the only extra HBM pass left; fuse into the consumer if possible.
    return out.T


def mlp_l_reference(mlp_in, weight, bias):
    y = mlp_in.astype(jnp.float32) @ weight.astype(jnp.float32).T + bias
    y = jnp.where(y >= 0, y, 0.01 * y)
    return jax.nn.softmax(y, axis=1)


if __name__ == "__main__":
    key = jax.random.PRNGKey(0)
    k_x, k_w, k_b, k_x2 = jax.random.split(key, 4)

    batch = 8
    n_mlp = 32

    # Deterministic synthetic parameters (shapes from Linear(n_mlp, 5)).
    x = jax.random.normal(k_x, (batch, n_mlp), dtype=jnp.float32)
    weight = jax.random.normal(k_w, (5, n_mlp), dtype=jnp.float32) * 0.1
    bias = jax.random.normal(k_b, (5,), dtype=jnp.float32) * 0.1

    # Small-batch, single full-array block path.
    out = jax.block_until_ready(mlp_l_forward(x, weight, bias))
    ref = mlp_l_reference(x, weight, bias)
    assert out.shape == (batch, 5)
    assert jnp.allclose(out, ref, atol=2e-3, rtol=2e-3), "mismatch vs reference (small)"

    # Multi-tile ragged path (no jnp.pad copy): 1300 rows -> 2 tiles of 768.
    big_batch = 1300
    x2 = jax.random.normal(k_x2, (big_batch, n_mlp), dtype=jnp.float32)
    out2 = jax.block_until_ready(mlp_l_forward(x2, weight, bias))
    ref2 = mlp_l_reference(x2, weight, bias)
    assert out2.shape == (big_batch, 5)
    assert jnp.allclose(out2, ref2, atol=2e-3, rtol=2e-3), "mismatch vs reference (tiled)"

    # bf16-input path: halves HBM reads, f32 MXU accumulation.
    out3 = jax.block_until_ready(mlp_l_forward(x2.astype(jnp.bfloat16), weight, bias))
    assert out3.shape == (big_batch, 5)
    assert jnp.allclose(out3, ref2, atol=5e-2, rtol=5e-2), "mismatch vs reference (bf16)"

    print("KERNEL_OK")
</pallas_src>

<mosaic_0001>
module attributes {stable_mosaic.version = 11 : i64} {
  func.func @mlp_l_kernel(%arg0: i32, %arg1: memref<8x32xf32, #tpu.memory_space<vmem>>, %arg2: memref<5x32xf32, #tpu.memory_space<vmem>>, %arg3: memref<5x1xf32, #tpu.memory_space<vmem>>, %arg4: memref<5x8xf32, #tpu.memory_space<vmem>>) attributes {dimension_semantics = [#tpu.dimension_semantics<parallel>], iteration_bounds = array<i64: 1>, scalar_prefetch = 0 : i64, scratch_operands = 0 : i64, tpu.core_type = #tpu.core_type<tc>, window_params = [{transform_indices = @transform_0, window_bounds = array<i64: 8, 32>}, {pipeline_mode = #tpu.pipeline_mode<synchronous>, transform_indices = @transform_1, window_bounds = array<i64: 5, 32>}, {pipeline_mode = #tpu.pipeline_mode<synchronous>, transform_indices = @transform_2, window_bounds = array<i64: 5, 1>}, {transform_indices = @transform_3, window_bounds = array<i64: 5, 8>}]} {
    %c0 = arith.constant 0 : index
    %c0_0 = arith.constant 0 : index
    %0 = vector.load %arg1[%c0, %c0_0] : memref<8x32xf32, #tpu.memory_space<vmem>>, vector<8x32xf32>
    %c0_1 = arith.constant 0 : index
    %c0_2 = arith.constant 0 : index
    %1 = vector.load %arg2[%c0_1, %c0_2] : memref<5x32xf32, #tpu.memory_space<vmem>>, vector<5x32xf32>
    %c0_3 = arith.constant 0 : index
    %c0_4 = arith.constant 0 : index
    %2 = vector.load %arg3[%c0_3, %c0_4] : memref<5x1xf32, #tpu.memory_space<vmem>>, vector<5x1xf32>
    %cst = arith.constant dense<0.000000e+00> : vector<5x8xf32>
    %3 = tpu.matmul %1, %0, %cst {dimension_numbers = #tpu.dot_dimension_numbers<[1], [1], [0], [0], [0, 0, 1, 0], [], []>} : vector<5x32xf32>, vector<8x32xf32>, vector<5x8xf32> -> vector<5x8xf32>
    %4 = vector.broadcast %2 : vector<5x1xf32> to vector<5x8xf32>
    %5 = arith.addf %3, %4 : vector<5x8xf32>
    %cst_5 = arith.constant 0.000000e+00 : f32
    %6 = vector.broadcast %cst_5 : f32 to vector<5x8xf32>
    %7 = arith.cmpf oge, %5, %6 : vector<5x8xf32>
    %cst_6 = arith.constant 0.00999999977 : f32
    %8 = vector.broadcast %cst_6 : f32 to vector<5x8xf32>
    %9 = arith.mulf %8, %5 : vector<5x8xf32>
    %10 = arith.select %7, %5, %9 : vector<5x8xi1>, vector<5x8xf32>
    %cst_7 = arith.constant dense<0xFF800000> : vector<8xf32>
    %11 = vector.multi_reduction <maximumf>, %10, %cst_7 [0] : vector<5x8xf32> to vector<8xf32>
    %12 = vector.shape_cast %11 : vector<8xf32> to vector<1x8xf32>
    %13 = vector.broadcast %12 : vector<1x8xf32> to vector<5x8xf32>
    %14 = arith.subf %10, %13 : vector<5x8xf32>
    %15 = math.exp %14 : vector<5x8xf32>
    %cst_8 = arith.constant dense<0.000000e+00> : vector<8xf32>
    %16 = vector.multi_reduction <add>, %15, %cst_8 [0] : vector<5x8xf32> to vector<8xf32>
    %17 = vector.shape_cast %16 : vector<8xf32> to vector<1x8xf32>
    %18 = tpu.reciprocal %17 : vector<1x8xf32> -> vector<1x8xf32>
    %19 = vector.broadcast %18 : vector<1x8xf32> to vector<5x8xf32>
    %20 = arith.mulf %15, %19 : vector<5x8xf32>
    %c0_9 = arith.constant 0 : index
    %c0_10 = arith.constant 0 : index
    %21 = vector.load %arg4[%c0_9, %c0_10] : memref<5x8xf32, #tpu.memory_space<vmem>>, vector<5x8xf32>
    tpu.vector_store %arg4[%c0_9, %c0_10], %20 {strides = array<i32>} : memref<5x8xf32, #tpu.memory_space<vmem>>, vector<5x8xf32>,
    return
  }
  func.func @transform_0(%arg0: i32) -> (i32, i32) {
    %c0_i32 = arith.constant 0 : i32
    %c0_i32_0 = arith.constant 0 : i32
    return %arg0, %c0_i32 : i32, i32
  }
  func.func @transform_1(%arg0: i32) -> (i32, i32) {
    %c0_i32 = arith.constant 0 : i32
    %c0_i32_0 = arith.constant 0 : i32
    %c0_i32_1 = arith.constant 0 : i32
    return %c0_i32, %c0_i32_0 : i32, i32
  }
  func.func @transform_2(%arg0: i32) -> (i32, i32) {
    %c0_i32 = arith.constant 0 : i32
    %c0_i32_0 = arith.constant 0 : i32
    %c0_i32_1 = arith.constant 0 : i32
    return %c0_i32, %c0_i32_0 : i32, i32
  }
  func.func @transform_3(%arg0: i32) -> (i32, i32) {
    %c0_i32 = arith.constant 0 : i32
    %c0_i32_0 = arith.constant 0 : i32
    return %c0_i32, %arg0 : i32, i32
  }
}

</mosaic_0001>

<llo_original>
// kernel: tpu_custom_call.1
$region0: #{tpu_custom_call.1}
  #allocation0 [shape = 'u32[]', space=smem, size = 0x4, offset = 0x4, fixed_abs, tag = 'smem constant byte address 0x4 - core index']
  #allocation1 [shape = 'u32[144,128]{1,0:T(1,128)}', space=vmem, size = 0x12000, scoped, tag = 'internal scratch']
  %s0 = inlined_call_operand.vmem [shape: f32[8,32], index: 0, kind: input, shape index: {}]
  %s1 = inlined_call_operand.hbm [shape: f32[5,32], index: 1, kind: input, shape index: {}]
  %s2 = inlined_call_operand.vmem [shape: f32[5,1], index: 2, kind: input, shape index: {}]
  %s3 = inlined_call_operand.hbm [shape: f32[5,8], index: 3, kind: output, shape index: {}]
  %s4 = sld [smem:[#allocation0]]
  $region26: #{tpu_custom_call.1} parent=0
    _
  %s6 = ssub.s32 1, %s4
  %s7 = scalar_select 0, %s6, %s4
  $region1: #{tpu_custom_call.1} parent=0
    #allocation2 [shape = 'u8[4096]{0}', space=vmem, size = 0x1000, scoped, tag = 'input window, operand 1, single buffered']
    #allocation3 [shape = 's32[1]{0}', space=sflag, size = 0x4, scoped, tag = 'scoped memory for tpu_custom_call.1']
    #allocation4 [shape = 's32[1]{0}', space=sflag, size = 0x4, scoped, tag = 'scoped memory for tpu_custom_call.1']
    #allocation5 [shape = 'u8[4096]{0}', space=vmem, size = 0x1000, scoped, tag = 'output window, operand 0, single buffered']
    %8 = vsyncpa [#allocation3], 0
    %9 = vsyncpa [#allocation4], 0
    // Predicated region
    $region2: #{tpu_custom_call.1} parent=1 // pred_check
      _
    $region3: #{tpu_custom_call.1} parent=1 // pred_check_branch
      %11 = sbr.rel (0) target = $region5
    $region4: #{tpu_custom_call.1} parent=1 // pred_region
      _
    $region5: #{tpu_custom_call.1} parent=1 // pred_fallthru
      _
    // Predicated region
    $region6: #{tpu_custom_call.1} parent=1 // pred_check
      _
    $region7: #{tpu_custom_call.1} parent=1 // pred_check_branch
      %13 = sbr.rel (0) target = $region9
    $region8: #{tpu_custom_call.1} parent=1 // pred_region
      %s15 = ssub.s32 128, 128
      %16 = vsyncadd [#allocation3], %s15
      %s18 = sshll.u32 [#allocation2], 4
      %s19 = int_to_ptr.vmem [resolvable:$true] %s18
      %21 = dma.hbm_to_vmem [thread:$0]  %s1, 128, %s19, [#allocation3]
    $region9: #{tpu_custom_call.1} parent=1 // pred_fallthru
      _
    // Predicated region
    $region10: #{tpu_custom_call.1} parent=1 // pred_check
      _
    $region11: #{tpu_custom_call.1} parent=1 // pred_check_branch
      %23 = sbr.rel (0) target = $region13
    $region12: #{tpu_custom_call.1} parent=1 // pred_region
      _
    $region13: #{tpu_custom_call.1} parent=1 // pred_fallthru
      _
    // Predicated region
    $region14: #{tpu_custom_call.1} parent=1 // pred_check
      _
    $region15: #{tpu_custom_call.1} parent=1 // pred_check_branch
      %25 = sbr.rel (0) target = $region17
    $region16: #{tpu_custom_call.1} parent=1 // pred_region
      %26 = dma.done [#allocation3], 128
    $region17: #{tpu_custom_call.1} parent=1 // pred_fallthru
      _
    %v27 = vld [vmem:[%s0] sm:$0xff]
    %v28 = vld [vmem:[#allocation2] sm:$0x1f]
    %v29 = vld [vmem:[%s2] sm:$0x1f]
    %31 = vset.pattern.permute.xlu0 0
    %32 = vperm.xlu0 %31, %v29
    %v33 = vpop.permute.xlu0 %32
    %vm35 = vcmask 261120
    %v37 = vsel %vm35, %v28, 0
    %v40 = vsel %vm35, %v27, 0
    %42 = vmatprep.subr.mxu0 0.0
    %43 = vmatpush1.xpose.msra.mxu0 0.0
    %44 = vmatprep.subr.mxu0 0.0
    %45 = vmatpush1.xpose.msra.mxu0 0.0
    %46 = vmatprep.subr.mxu0 0.0
    %47 = vmatpush1.xpose.msra.mxu0 0.0
    %48 = vmatprep.subr.mxu0 0.0
    %49 = vmatpush1.xpose.msra.mxu0 0.0
    %50 = vmatprep.subr.mxu0 0.0
    %51 = vmatpush1.xpose.msra.mxu0 0.0
    %52 = vmatprep.subr.mxu0 0.0
    %53 = vmatpush1.xpose.msra.mxu0 0.0
    %54 = vmatprep.subr.mxu0 0.0
    %55 = vmatpush1.xpose.msra.mxu0 0.0
    %56 = vmatprep.subr.mxu0 0.0
    %57 = vmatpush1.xpose.msra.mxu0 0.0
    %58 = vmatprep.subr.mxu0 0.0
    %59 = vmatpush1.xpose.msra.mxu0 0.0
    %60 = vmatprep.subr.mxu0 0.0
    %61 = vmatpush1.xpose.msra.mxu0 0.0
    %62 = vmatprep.subr.mxu0 0.0
    %63 = vmatpush1.xpose.msra.mxu0 0.0
    %64 = vmatprep.subr.mxu0 0.0
    %65 = vmatpush1.xpose.msra.mxu0 0.0
    %66 = vmatprep.subr.mxu0 0.0
    %67 = vmatpush1.xpose.msra.mxu0 0.0
    %68 = vmatprep.subr.mxu0 0.0
    %69 = vmatpush1.xpose.msra.mxu0 0.0
    %70 = vmatprep.subr.mxu0 0.0
    %71 = vmatpush1.xpose.msra.mxu0 0.0
    %72 = vmatprep.subr.mxu0 0.0
    %73 = vmatpush1.xpose.msra.mxu0 %v40
    %74 = vmatprep.subr.mxu0 0.0
    %75 = vmatpush2.xpose.msra.mxu0 0.0
    %76 = vmatprep.subr.mxu0 0.0
    %77 = vmatpush2.xpose.msra.mxu0 0.0
    %78 = vmatprep.subr.mxu0 0.0
    %79 = vmatpush2.xpose.msra.mxu0 0.0
    %80 = vmatprep.subr.mxu0 0.0
    %81 = vmatpush2.xpose.msra.mxu0 0.0
    %82 = vmatprep.subr.mxu0 0.0
    %83 = vmatpush2.xpose.msra.mxu0 0.0
    %84 = vmatprep.subr.mxu0 0.0
    %85 = vmatpush2.xpose.msra.mxu0 0.0
    %86 = vmatprep.subr.mxu0 0.0
    %87 = vmatpush2.xpose.msra.mxu0 0.0
    %88 = vmatprep.subr.mxu0 0.0
    %89 = vmatpush2.xpose.msra.mxu0 0.0
    %90 = vmatprep.subr.mxu0 0.0
    %91 = vmatpush2.xpose.msra.mxu0 0.0
    %92 = vmatprep.subr.mxu0 0.0
    %93 = vmatpush2.xpose.msra.mxu0 0.0
    %94 = vmatprep.subr.mxu0 0.0
    %95 = vmatpush2.xpose.msra.mxu0 0.0
    %96 = vmatprep.subr.mxu0 0.0
    %97 = vmatpush2.xpose.msra.mxu0 0.0
    %98 = vmatprep.subr.mxu0 0.0
    %99 = vmatpush2.xpose.msra.mxu0 0.0
    %100 = vmatprep.subr.mxu0 0.0
    %101 = vmatpush2.xpose.msra.mxu0 0.0
    %102 = vmatprep.subr.mxu0 0.0
    %103 = vmatpush2.xpose.msra.mxu0 0.0
    %104 = vmatprep.subr.mxu0 0.0
    %105 = vmatpush2.xpose.msra.mxu0 0.0
    %106 = vmatprep.mubr.f32.mxu0 0.0
    %107 = vmatmul.mubr.f32.gmra.mxu0 %v37
    %v108 = vpop.f32.mrf.mxu0
    %v109 = vadd.f32 %v33, %v108
    %v110 = vpop.f32.mrf.mxu0
    %111 = vdwg.mxu0
    %vm112 = vcmp.ge.f32.partialorder %v109, 0.0
    %v113 = vmul.f32 %v109, 0.01
    %v114 = vsel %vm112, %v109, %v113
    %vm115 = vcmask 61440
    %v116 = vsel %vm115, %v114, -inf
    %v117 = vrot.slane %v116, 4
    %v118 = vmax.f32 %v116, %v117
    %v119 = vrot.slane %v118, 2
    %v120 = vmax.f32 %v118, %v119
    %v121 = vrot.slane %v120, 1
    %v122 = vmax.f32 %v120, %v121
    %v123 = vsub.f32 %v114, %v122
    %v124 = vmul.f32 %v123, 1.442695
    %v125 = vpow.pop %v124
    %v126 = vsel %vm115, %v125, 0.0
    %v127 = vrot.slane %v126, 4
    %v128 = vadd.f32 %v126, %v127
    %v129 = vrot.slane %v128, 2
    %v130 = vadd.f32 %v128, %v129
    %v131 = vrot.slane %v130, 1
    %v132 = vadd.f32 %v130, %v131
    %v133 = vrcp.pop %v132
    %v134 = vmul.f32 %v125, %v133
    %135 = vst.msk [vmem:[#allocation5] sm:$0x1f] %vm115, %v134
    // Predicated region
    $region18: #{tpu_custom_call.1} parent=1 // pred_check
      _
    $region19: #{tpu_custom_call.1} parent=1 // pred_check_branch
      %137 = sbr.rel (0) target = $region21
    $region20: #{tpu_custom_call.1} parent=1 // pred_region
      %s139 = ssub.s32 128, 128
      %140 = vsyncadd [#allocation4], %s139
      %s142 = sshll.u32 [#allocation5], 4
      %s143 = int_to_ptr.vmem [resolvable:$true] %s142
      %145 = dma.vmem_to_hbm [thread:$0]  %s143, 128, %s3, [#allocation4]
    $region21: #{tpu_custom_call.1} parent=1 // pred_fallthru
      _
    // Predicated region
    $region22: #{tpu_custom_call.1} parent=1 // pred_check
      _
    $region23: #{tpu_custom_call.1} parent=1 // pred_check_branch
      %147 = sbr.rel (0) target = $region25
    $region24: #{tpu_custom_call.1} parent=1 // pred_region
      %148 = dma.done [#allocation4], 128
    $region25: #{tpu_custom_call.1} parent=1 // pred_fallthru
      _
    %149 = vsyncpa [#allocation3], 1
    %150 = vsyncpa [#allocation4], 1

</llo_original>
